<compile_context>
chip_gen: v6e
topology: v6e:2x2x1
jax: 0.10.0
libtpu: 0.0.40
codegen_flags: <defaults>
</compile_context>

<pallas_src>
import math
import functools

import jax
import jax.numpy as jnp
from jax import lax
from jax.experimental import pallas as pl
from jax.experimental.pallas import tpu as pltpu

LANE = 128


def _cross_attention_kernel(q_ref, kv_ref, wq_ref, wkv_ref, wo_ref, bo_ref,
                            out_ref, *, num_heads: int, hd_pad: int):
    f32 = jnp.float32
    q_len = q_ref.shape[0]
    out_width = out_ref.shape[-1]

    q = q_ref[...]      # (Lq,  E+1)  native dtype; MXU accumulates in f32
    kv = kv_ref[...]    # (Lkv, E+1)

    # Output-projection bias initializes the lane-dense f32 accumulator.
    acc = jnp.broadcast_to(bo_ref[...].astype(f32), (q_len, out_width))

    # Tiny static head count -> fully unrolled at trace time. All per-head
    # operands are leading-axis slabs; no lane-offset (<128) slicing anywhere.
    # TODO(synk): switch to lax.fori_loop(..., unroll=True) if num_heads grows
    # beyond a handful (bounds vreg live ranges).
    for h in range(num_heads):
        # Per-head projections. Biases are folded in via the ones column of
        # the activations; 1/sqrt(head_dim) is folded into wq in the wrapper.
        qh = jnp.dot(q, wq_ref[h], preferred_element_type=f32)       # (Lq, 128)
        kvh = jnp.dot(kv, wkv_ref[h], preferred_element_type=f32)    # (Lkv, 256)
        kh = kvh[:, :hd_pad]          # (Lkv, 128), 128-aligned lane slice
        vh = kvh[:, hd_pad:]          # (Lkv, 128), 128-aligned lane slice

        # Scores: contract the (padded) head dim of both operands directly —
        # padded lanes are zero in both, so they contribute nothing.
        s = lax.dot_general(qh, kh, (((1,), (1,)), ((), ())),
                            preferred_element_type=f32)              # (Lq, Lkv)

        # Numerically-stable softmax along kv, kept in f32; denominator via
        # the EUP approximate reciprocal (separate issue slot).
        m = jnp.max(s, axis=-1, keepdims=True)
        e = jnp.exp(s - m)
        denom = jnp.sum(e, axis=-1, keepdims=True)
        w = e * pl.reciprocal(denom, approx=True)                     # (Lq, Lkv)

        pv = jnp.dot(w, vh, preferred_element_type=f32)               # (Lq, 128)

        # Head-combine fused into the output projection: per-head W_out slab
        # (zero-padded rows/cols), accumulated into the lane-dense buffer.
        acc = acc + jnp.dot(pv, wo_ref[h], preferred_element_type=f32)

    out_ref[...] = acc.astype(out_ref.dtype)                          # (Lq, 128) lane-dense store


def cross_attention(query, key_value, params, *, num_heads: int):
    """query: (B, Lq, E), key_value: (B, Lkv, E). Returns (B, Lq, E)."""
    B, Lq, E = query.shape
    _, Lkv, _ = key_value.shape
    hd = E // num_heads
    assert hd * num_heads == E

    wq, bq, wk, bk, wv, bv, wo, bo = params   # weights [in,out], biases [1,E]

    hd_pad = ((hd + LANE - 1) // LANE) * LANE      # lane-dense per-head width
    e_pad = ((E + LANE - 1) // LANE) * LANE        # lane-dense output width
    scale = 1.0 / math.sqrt(hd)

    def per_head_in(w, b):
        # [in=E, out=E], [1, out=E] -> (H, E+1, hd): per-head output columns,
        # bias appended as an extra input row (consumed by the activations'
        # ones column).
        w_h = w.reshape(E, num_heads, hd).transpose(1, 0, 2)
        b_h = b.reshape(1, num_heads, hd).transpose(1, 0, 2)
        return jnp.concatenate([w_h, b_h], axis=1)

    # Q projection: fold bias + 1/sqrt(hd) score scale; lane-pad the head dim.
    wq_h = per_head_in(wq, bq) * scale
    wq_h = jnp.pad(wq_h, ((0, 0), (0, 0), (0, hd_pad - hd)))          # (H, E+1, 128)

    # K and V projections fused per head into one (E+1, 2*hd_pad) slab, with
    # k / v halves at 128-aligned lane offsets.
    wk_h = jnp.pad(per_head_in(wk, bk), ((0, 0), (0, 0), (0, hd_pad - hd)))
    wv_h = jnp.pad(per_head_in(wv, bv), ((0, 0), (0, 0), (0, hd_pad - hd)))
    wkv_h = jnp.concatenate([wk_h, wv_h], axis=2)                     # (H, E+1, 256)

    # Output projection: per-head input slab, zero-padded rows (head dim) and
    # zero-padded columns (lane-dense output).
    wo_h = wo.reshape(num_heads, hd, E)
    wo_h = jnp.pad(wo_h, ((0, 0), (0, hd_pad - hd), (0, e_pad - E)))  # (H, 128, 128)
    bo_p = jnp.pad(bo, ((0, 0), (0, e_pad - E)))                      # (1, 128)

    # Append a ones column so the projection biases ride along in the matmul.
    q_aug = jnp.concatenate(
        [query, jnp.ones((B, Lq, 1), query.dtype)], axis=-1)          # (B, Lq, E+1)
    kv_aug = jnp.concatenate(
        [key_value, jnp.ones((B, Lkv, 1), key_value.dtype)], axis=-1)  # (B, Lkv, E+1)

    kernel = functools.partial(_cross_attention_kernel,
                               num_heads=num_heads, hd_pad=hd_pad)

    out_padded = pl.pallas_call(
        kernel,
        out_shape=jax.ShapeDtypeStruct((B, Lq, e_pad), query.dtype),
        grid_spec=pltpu.PrefetchScalarGridSpec(
            num_scalar_prefetch=0,
            grid=(B,),                                   # one batch per grid step
            in_specs=[
                pl.BlockSpec((None, Lq, E + 1), lambda b: (b, 0, 0)),     # query (per batch)
                pl.BlockSpec((None, Lkv, E + 1), lambda b: (b, 0, 0)),    # key_value (per batch)
                pl.BlockSpec((num_heads, E + 1, hd_pad), lambda b: (0, 0, 0)),      # wq (+bq, *scale)
                pl.BlockSpec((num_heads, E + 1, 2 * hd_pad), lambda b: (0, 0, 0)),  # wk|wv (+bk|bv)
                pl.BlockSpec((num_heads, hd_pad, e_pad), lambda b: (0, 0, 0)),      # per-head W_out
                pl.BlockSpec((1, e_pad), lambda b: (0, 0)),                         # b_out (lane-padded)
            ],
            out_specs=pl.BlockSpec((None, Lq, e_pad), lambda b: (b, 0, 0)),
        ),
        compiler_params=pltpu.CompilerParams(
            dimension_semantics=("parallel",)),          # megacore sharding over batch (v7x)
    )(q_aug, kv_aug, wq_h, wkv_h, wo_h, bo_p)

    # Un-pad the lane dimension outside the kernel.
    return out_padded[:, :, :E]


def _reference(query, key_value, params, *, num_heads: int):
    """Pure-JAX reference mirroring the PyTorch forward."""
    wq, bq, wk, bk, wv, bv, wo, bo = params
    B, Lq, E = query.shape
    Lkv = key_value.shape[1]
    hd = E // num_heads

    q = query @ wq + bq
    k = key_value @ wk + bk
    v = key_value @ wv + bv

    q = q.reshape(B, Lq, num_heads, hd).transpose(0, 2, 1, 3)
    k = k.reshape(B, Lkv, num_heads, hd).transpose(0, 2, 1, 3)
    v = v.reshape(B, Lkv, num_heads, hd).transpose(0, 2, 1, 3)

    scores = jnp.einsum("bhqd,bhkd->bhqk", q, k) / math.sqrt(hd)
    w = jax.nn.softmax(scores, axis=-1)
    out = jnp.einsum("bhqk,bhkd->bhqd", w, v)
    out = out.transpose(0, 2, 1, 3).reshape(B, Lq, E)
    return out @ wo + bo


if __name__ == "__main__":
    batch_size = 1
    embed_dim = 4
    num_heads = 2
    query_seq_len = 5
    kv_seq_len = 7

    key = jax.random.PRNGKey(0)
    keys = jax.random.split(key, 12)

    query = jax.random.normal(keys[0], (batch_size, query_seq_len, embed_dim),
                              dtype=jnp.float32)
    key_value = jax.random.normal(keys[1], (batch_size, kv_seq_len, embed_dim),
                                  dtype=jnp.float32)

    # Deterministic nn.Linear-style init, stored as [in,out] weights / [1,out] biases.
    bound = 1.0 / math.sqrt(embed_dim)

    def init_linear(kw, kb):
        w = jax.random.uniform(kw, (embed_dim, embed_dim),
                               minval=-bound, maxval=bound, dtype=jnp.float32)
        b = jax.random.uniform(kb, (1, embed_dim),
                               minval=-bound, maxval=bound, dtype=jnp.float32)
        return w, b

    wq, bq = init_linear(keys[2], keys[3])
    wk, bk = init_linear(keys[4], keys[5])
    wv, bv = init_linear(keys[6], keys[7])
    wo, bo = init_linear(keys[8], keys[9])
    params = (wq, bq, wk, bk, wv, bv, wo, bo)

    out = cross_attention(query, key_value, params, num_heads=num_heads)
    out = jax.block_until_ready(out)
    ref = _reference(query, key_value, params, num_heads=num_heads)
    assert out.shape == (batch_size, query_seq_len, embed_dim)
    # Tolerance accommodates the approximate (EUP) reciprocal in the softmax.
    assert jnp.allclose(out, ref, atol=1e-2, rtol=1e-3), "mismatch vs reference (B=1)"

    # Also exercise the batched path (B>1): per-batch grid steps, weights
    # resident across steps, parallel semantics for megacore.
    q3 = jax.random.normal(keys[10], (3, query_seq_len, embed_dim), dtype=jnp.float32)
    kv3 = jax.random.normal(keys[11], (3, kv_seq_len, embed_dim), dtype=jnp.float32)
    out3 = jax.block_until_ready(cross_attention(q3, kv3, params, num_heads=num_heads))
    ref3 = _reference(q3, kv3, params, num_heads=num_heads)
    assert jnp.allclose(out3, ref3, atol=1e-2, rtol=1e-3), "mismatch vs reference (B=3)"

    print("KERNEL_OK")
</pallas_src>

<mosaic_0001>
module attributes {stable_mosaic.version = 11 : i64} {
  func.func @_cross_attention_kernel(%arg0: i32, %arg1: memref<1x5x5xf32, #tpu.memory_space<vmem>>, %arg2: memref<1x7x5xf32, #tpu.memory_space<vmem>>, %arg3: memref<2x5x128xf32, #tpu.memory_space<vmem>>, %arg4: memref<2x5x256xf32, #tpu.memory_space<vmem>>, %arg5: memref<2x128x128xf32, #tpu.memory_space<vmem>>, %arg6: memref<1x128xf32, #tpu.memory_space<vmem>>, %arg7: memref<1x5x128xf32, #tpu.memory_space<vmem>>) attributes {dimension_semantics = [#tpu.dimension_semantics<parallel>], iteration_bounds = array<i64: 1>, scalar_prefetch = 0 : i64, scratch_operands = 0 : i64, tpu.core_type = #tpu.core_type<tc>, window_params = [{transform_indices = @transform_0, window_bounds = array<i64: 1, 5, 5>}, {transform_indices = @transform_1, window_bounds = array<i64: 1, 7, 5>}, {pipeline_mode = #tpu.pipeline_mode<synchronous>, transform_indices = @transform_2, window_bounds = array<i64: 2, 5, 128>}, {pipeline_mode = #tpu.pipeline_mode<synchronous>, transform_indices = @transform_3, window_bounds = array<i64: 2, 5, 256>}, {pipeline_mode = #tpu.pipeline_mode<synchronous>, transform_indices = @transform_4, window_bounds = array<i64: 2, 128, 128>}, {pipeline_mode = #tpu.pipeline_mode<synchronous>, transform_indices = @transform_5, window_bounds = array<i64: 1, 128>}, {transform_indices = @transform_6, window_bounds = array<i64: 1, 5, 128>}]} {
    %c0 = arith.constant 0 : index
    %c0_0 = arith.constant 0 : index
    %c0_1 = arith.constant 0 : index
    %0 = vector.load %arg1[%c0, %c0_0, %c0_1] : memref<1x5x5xf32, #tpu.memory_space<vmem>>, vector<1x5x5xf32>
    %1 = vector.shape_cast %0 : vector<1x5x5xf32> to vector<5x5xf32>
    %c0_2 = arith.constant 0 : index
    %c0_3 = arith.constant 0 : index
    %c0_4 = arith.constant 0 : index
    %2 = vector.load %arg2[%c0_2, %c0_3, %c0_4] : memref<1x7x5xf32, #tpu.memory_space<vmem>>, vector<1x7x5xf32>
    %3 = vector.shape_cast %2 : vector<1x7x5xf32> to vector<7x5xf32>
    %c0_5 = arith.constant 0 : index
    %c0_6 = arith.constant 0 : index
    %4 = vector.load %arg6[%c0_5, %c0_6] : memref<1x128xf32, #tpu.memory_space<vmem>>, vector<1x128xf32>
    %5 = vector.shape_cast %4 : vector<1x128xf32> to vector<1x128xf32>
    %6 = vector.broadcast %5 : vector<1x128xf32> to vector<5x128xf32>
    %c0_7 = arith.constant 0 : index
    %c0_8 = arith.constant 0 : index
    %c0_9 = arith.constant 0 : index
    %7 = vector.load %arg3[%c0_7, %c0_8, %c0_9] : memref<2x5x128xf32, #tpu.memory_space<vmem>>, vector<1x5x128xf32>
    %8 = vector.shape_cast %7 : vector<1x5x128xf32> to vector<5x128xf32>
    %cst = arith.constant dense<0.000000e+00> : vector<5x128xf32>
    %9 = tpu.matmul %1, %8, %cst {dimension_numbers = #tpu.dot_dimension_numbers<[1], [0], [0], [1], [0, 0, 1, 1], [], []>} : vector<5x5xf32>, vector<5x128xf32>, vector<5x128xf32> -> vector<5x128xf32>
    %c0_10 = arith.constant 0 : index
    %c0_11 = arith.constant 0 : index
    %c0_12 = arith.constant 0 : index
    %10 = vector.load %arg4[%c0_10, %c0_11, %c0_12] : memref<2x5x256xf32, #tpu.memory_space<vmem>>, vector<1x5x256xf32>
    %11 = vector.shape_cast %10 : vector<1x5x256xf32> to vector<5x256xf32>
    %cst_13 = arith.constant dense<0.000000e+00> : vector<7x256xf32>
    %12 = tpu.matmul %3, %11, %cst_13 {dimension_numbers = #tpu.dot_dimension_numbers<[1], [0], [0], [1], [0, 0, 1, 1], [], []>} : vector<7x5xf32>, vector<5x256xf32>, vector<7x256xf32> -> vector<7x256xf32>
    %13 = vector.extract_strided_slice %12 {offsets = [0, 0], sizes = [7, 128], strides = [1, 1]} : vector<7x256xf32> to vector<7x128xf32>
    %14 = vector.extract_strided_slice %12 {offsets = [0, 128], sizes = [7, 128], strides = [1, 1]} : vector<7x256xf32> to vector<7x128xf32>
    %cst_14 = arith.constant dense<0.000000e+00> : vector<5x7xf32>
    %15 = tpu.matmul %9, %13, %cst_14 {dimension_numbers = #tpu.dot_dimension_numbers<[1], [1], [0], [0], [0, 0, 1, 0], [], []>} : vector<5x128xf32>, vector<7x128xf32>, vector<5x7xf32> -> vector<5x7xf32>
    %cst_15 = arith.constant dense<0xFF800000> : vector<5xf32>
    %16 = vector.multi_reduction <maximumf>, %15, %cst_15 [1] : vector<5x7xf32> to vector<5xf32>
    %17 = vector.shape_cast %16 : vector<5xf32> to vector<5x1xf32>
    %18 = vector.broadcast %17 : vector<5x1xf32> to vector<5x7xf32>
    %19 = arith.subf %15, %18 : vector<5x7xf32>
    %20 = math.exp %19 : vector<5x7xf32>
    %cst_16 = arith.constant dense<0.000000e+00> : vector<5xf32>
    %21 = vector.multi_reduction <add>, %20, %cst_16 [1] : vector<5x7xf32> to vector<5xf32>
    %22 = vector.shape_cast %21 : vector<5xf32> to vector<5x1xf32>
    %23 = tpu.reciprocal %22 {approx = true} : vector<5x1xf32> -> vector<5x1xf32>
    %24 = vector.broadcast %23 : vector<5x1xf32> to vector<5x7xf32>
    %25 = arith.mulf %20, %24 : vector<5x7xf32>
    %cst_17 = arith.constant dense<0.000000e+00> : vector<5x128xf32>
    %26 = tpu.matmul %25, %14, %cst_17 {dimension_numbers = #tpu.dot_dimension_numbers<[1], [0], [0], [1], [0, 0, 1, 1], [], []>} : vector<5x7xf32>, vector<7x128xf32>, vector<5x128xf32> -> vector<5x128xf32>
    %c0_18 = arith.constant 0 : index
    %c0_19 = arith.constant 0 : index
    %c0_20 = arith.constant 0 : index
    %27 = vector.load %arg5[%c0_18, %c0_19, %c0_20] : memref<2x128x128xf32, #tpu.memory_space<vmem>>, vector<1x128x128xf32>
    %28 = vector.shape_cast %27 : vector<1x128x128xf32> to vector<128x128xf32>
    %cst_21 = arith.constant dense<0.000000e+00> : vector<5x128xf32>
    %29 = tpu.matmul %26, %28, %cst_21 {dimension_numbers = #tpu.dot_dimension_numbers<[1], [0], [0], [1], [0, 0, 1, 1], [], []>} : vector<5x128xf32>, vector<128x128xf32>, vector<5x128xf32> -> vector<5x128xf32>
    %30 = arith.addf %6, %29 : vector<5x128xf32>
    %c1 = arith.constant 1 : index
    %c0_22 = arith.constant 0 : index
    %c0_23 = arith.constant 0 : index
    %31 = vector.load %arg3[%c1, %c0_22, %c0_23] : memref<2x5x128xf32, #tpu.memory_space<vmem>>, vector<1x5x128xf32>
    %32 = vector.shape_cast %31 : vector<1x5x128xf32> to vector<5x128xf32>
    %cst_24 = arith.constant dense<0.000000e+00> : vector<5x128xf32>
    %33 = tpu.matmul %1, %32, %cst_24 {dimension_numbers = #tpu.dot_dimension_numbers<[1], [0], [0], [1], [0, 0, 1, 1], [], []>} : vector<5x5xf32>, vector<5x128xf32>, vector<5x128xf32> -> vector<5x128xf32>
    %c1_25 = arith.constant 1 : index
    %c0_26 = arith.constant 0 : index
    %c0_27 = arith.constant 0 : index
    %34 = vector.load %arg4[%c1_25, %c0_26, %c0_27] : memref<2x5x256xf32, #tpu.memory_space<vmem>>, vector<1x5x256xf32>
    %35 = vector.shape_cast %34 : vector<1x5x256xf32> to vector<5x256xf32>
    %cst_28 = arith.constant dense<0.000000e+00> : vector<7x256xf32>
    %36 = tpu.matmul %3, %35, %cst_28 {dimension_numbers = #tpu.dot_dimension_numbers<[1], [0], [0], [1], [0, 0, 1, 1], [], []>} : vector<7x5xf32>, vector<5x256xf32>, vector<7x256xf32> -> vector<7x256xf32>
    %37 = vector.extract_strided_slice %36 {offsets = [0, 0], sizes = [7, 128], strides = [1, 1]} : vector<7x256xf32> to vector<7x128xf32>
    %38 = vector.extract_strided_slice %36 {offsets = [0, 128], sizes = [7, 128], strides = [1, 1]} : vector<7x256xf32> to vector<7x128xf32>
    %cst_29 = arith.constant dense<0.000000e+00> : vector<5x7xf32>
    %39 = tpu.matmul %33, %37, %cst_29 {dimension_numbers = #tpu.dot_dimension_numbers<[1], [1], [0], [0], [0, 0, 1, 0], [], []>} : vector<5x128xf32>, vector<7x128xf32>, vector<5x7xf32> -> vector<5x7xf32>
    %cst_30 = arith.constant dense<0xFF800000> : vector<5xf32>
    %40 = vector.multi_reduction <maximumf>, %39, %cst_30 [1] : vector<5x7xf32> to vector<5xf32>
    %41 = vector.shape_cast %40 : vector<5xf32> to vector<5x1xf32>
    %42 = vector.broadcast %41 : vector<5x1xf32> to vector<5x7xf32>
    %43 = arith.subf %39, %42 : vector<5x7xf32>
    %44 = math.exp %43 : vector<5x7xf32>
    %cst_31 = arith.constant dense<0.000000e+00> : vector<5xf32>
    %45 = vector.multi_reduction <add>, %44, %cst_31 [1] : vector<5x7xf32> to vector<5xf32>
    %46 = vector.shape_cast %45 : vector<5xf32> to vector<5x1xf32>
    %47 = tpu.reciprocal %46 {approx = true} : vector<5x1xf32> -> vector<5x1xf32>
    %48 = vector.broadcast %47 : vector<5x1xf32> to vector<5x7xf32>
    %49 = arith.mulf %44, %48 : vector<5x7xf32>
    %cst_32 = arith.constant dense<0.000000e+00> : vector<5x128xf32>
    %50 = tpu.matmul %49, %38, %cst_32 {dimension_numbers = #tpu.dot_dimension_numbers<[1], [0], [0], [1], [0, 0, 1, 1], [], []>} : vector<5x7xf32>, vector<7x128xf32>, vector<5x128xf32> -> vector<5x128xf32>
    %c1_33 = arith.constant 1 : index
    %c0_34 = arith.constant 0 : index
    %c0_35 = arith.constant 0 : index
    %51 = vector.load %arg5[%c1_33, %c0_34, %c0_35] : memref<2x128x128xf32, #tpu.memory_space<vmem>>, vector<1x128x128xf32>
    %52 = vector.shape_cast %51 : vector<1x128x128xf32> to vector<128x128xf32>
    %cst_36 = arith.constant dense<0.000000e+00> : vector<5x128xf32>
    %53 = tpu.matmul %50, %52, %cst_36 {dimension_numbers = #tpu.dot_dimension_numbers<[1], [0], [0], [1], [0, 0, 1, 1], [], []>} : vector<5x128xf32>, vector<128x128xf32>, vector<5x128xf32> -> vector<5x128xf32>
    %54 = arith.addf %30, %53 : vector<5x128xf32>
    %c0_37 = arith.constant 0 : index
    %c0_38 = arith.constant 0 : index
    %c0_39 = arith.constant 0 : index
    %55 = vector.load %arg7[%c0_37, %c0_38, %c0_39] : memref<1x5x128xf32, #tpu.memory_space<vmem>>, vector<1x5x128xf32>
    %56 = vector.shape_cast %55 : vector<1x5x128xf32> to vector<5x128xf32>
    %57 = vector.shape_cast %54 : vector<5x128xf32> to vector<1x5x128xf32>
    tpu.vector_store %arg7[%c0_37, %c0_38, %c0_39], %57 {strides = array<i32>} : memref<1x5x128xf32, #tpu.memory_space<vmem>>, vector<1x5x128xf32>,
    return
  }
  func.func @transform_0(%arg0: i32) -> (i32, i32, i32) {
    %c0_i32 = arith.constant 0 : i32
    %c0_i32_0 = arith.constant 0 : i32
    %c0_i32_1 = arith.constant 0 : i32
    return %arg0, %c0_i32, %c0_i32_0 : i32, i32, i32
  }
  func.func @transform_1(%arg0: i32) -> (i32, i32, i32) {
    %c0_i32 = arith.constant 0 : i32
    %c0_i32_0 = arith.constant 0 : i32
    %c0_i32_1 = arith.constant 0 : i32
    return %arg0, %c0_i32, %c0_i32_0 : i32, i32, i32
  }
  func.func @transform_2(%arg0: i32) -> (i32, i32, i32) {
    %c0_i32 = arith.constant 0 : i32
    %c0_i32_0 = arith.constant 0 : i32
    %c0_i32_1 = arith.constant 0 : i32
    %c0_i32_2 = arith.constant 0 : i32
    return %c0_i32, %c0_i32_0, %c0_i32_1 : i32, i32, i32
  }
  func.func @transform_3(%arg0: i32) -> (i32, i32, i32) {
    %c0_i32 = arith.constant 0 : i32
    %c0_i32_0 = arith.constant 0 : i32
    %c0_i32_1 = arith.constant 0 : i32
    %c0_i32_2 = arith.constant 0 : i32
    return %c0_i32, %c0_i32_0, %c0_i32_1 : i32, i32, i32
  }
  func.func @transform_4(%arg0: i32) -> (i32, i32, i32) {
    %c0_i32 = arith.constant 0 : i32
    %c0_i32_0 = arith.constant 0 : i32
    %c0_i32_1 = arith.constant 0 : i32
    %c0_i32_2 = arith.constant 0 : i32
    return %c0_i32, %c0_i32_0, %c0_i32_1 : i32, i32, i32
  }
  func.func @transform_5(%arg0: i32) -> (i32, i32) {
    %c0_i32 = arith.constant 0 : i32
    %c0_i32_0 = arith.constant 0 : i32
    %c0_i32_1 = arith.constant 0 : i32
    return %c0_i32, %c0_i32_0 : i32, i32
  }
  func.func @transform_6(%arg0: i32) -> (i32, i32, i32) {
    %c0_i32 = arith.constant 0 : i32
    %c0_i32_0 = arith.constant 0 : i32
    %c0_i32_1 = arith.constant 0 : i32
    return %arg0, %c0_i32, %c0_i32_0 : i32, i32, i32
  }
}

</mosaic_0001>

<llo_original>
// kernel: tpu_custom_call.1
$region0: #{tpu_custom_call.1}
  #allocation0 [shape = 'u32[]', space=smem, size = 0x4, offset = 0x4, fixed_abs, tag = 'smem constant byte address 0x4 - core index']
  #allocation1 [shape = 'u32[144,128]{1,0:T(1,128)}', space=vmem, size = 0x12000, scoped, tag = 'internal scratch']
  %s0 = inlined_call_operand.vmem [shape: f32[1,5,5], index: 0, kind: input, shape index: {}]
  %s1 = inlined_call_operand.vmem [shape: f32[1,7,5], index: 1, kind: input, shape index: {}]
  %s2 = inlined_call_operand.vmem [shape: f32[2,5,128], index: 2, kind: input, shape index: {}]
  %s3 = inlined_call_operand.vmem [shape: f32[2,5,256], index: 3, kind: input, shape index: {}]
  %s4 = inlined_call_operand.hbm [shape: f32[2,128,128], index: 4, kind: input, shape index: {}]
  %s5 = inlined_call_operand.vmem [shape: f32[1,128], index: 5, kind: input, shape index: {}]
  %s6 = inlined_call_operand.vmem [shape: f32[1,5,128], index: 6, kind: output, shape index: {}]
  %s7 = sld [smem:[#allocation0]]
  $region38: #{tpu_custom_call.1} parent=0
    _
  %s9 = ssub.s32 1, %s7
  %s10 = scalar_select 0, %s9, %s7
  $region1: #{tpu_custom_call.1} parent=0
    #allocation2 [shape = 'u8[131072]{0}', space=vmem, size = 0x20000, scoped, tag = 'input window, operand 4, single buffered']
    #allocation3 [shape = 's32[1]{0}', space=sflag, size = 0x4, scoped, tag = 'scoped memory for tpu_custom_call.1']
    %11 = vsyncpa [#allocation3], 0
    // Predicated region
    $region2: #{tpu_custom_call.1} parent=1 // pred_check
      _
    $region3: #{tpu_custom_call.1} parent=1 // pred_check_branch
      %13 = sbr.rel (0) target = $region5
    $region4: #{tpu_custom_call.1} parent=1 // pred_region
      _
    $region5: #{tpu_custom_call.1} parent=1 // pred_fallthru
      _
    // Predicated region
    $region6: #{tpu_custom_call.1} parent=1 // pred_check
      _
    $region7: #{tpu_custom_call.1} parent=1 // pred_check_branch
      %15 = sbr.rel (0) target = $region9
    $region8: #{tpu_custom_call.1} parent=1 // pred_region
      _
    $region9: #{tpu_custom_call.1} parent=1 // pred_fallthru
      _
    // Predicated region
    $region10: #{tpu_custom_call.1} parent=1 // pred_check
      _
    $region11: #{tpu_custom_call.1} parent=1 // pred_check_branch
      %17 = sbr.rel (0) target = $region13
    $region12: #{tpu_custom_call.1} parent=1 // pred_region
      _
    $region13: #{tpu_custom_call.1} parent=1 // pred_fallthru
      _
    // Predicated region
    $region14: #{tpu_custom_call.1} parent=1 // pred_check
      _
    $region15: #{tpu_custom_call.1} parent=1 // pred_check_branch
      %19 = sbr.rel (0) target = $region17
    $region16: #{tpu_custom_call.1} parent=1 // pred_region
      _
    $region17: #{tpu_custom_call.1} parent=1 // pred_fallthru
      _
    // Predicated region
    $region18: #{tpu_custom_call.1} parent=1 // pred_check
      _
    $region19: #{tpu_custom_call.1} parent=1 // pred_check_branch
      %21 = sbr.rel (0) target = $region21
    $region20: #{tpu_custom_call.1} parent=1 // pred_region
      %s23 = ssub.s32 4096, 4096
      %24 = vsyncadd [#allocation3], %s23
      %s25 = sshll.u32 [#allocation2], 4
      %s26 = int_to_ptr.vmem [resolvable:$true] %s25
      %31 = dma.hbm_to_vmem [thread:$0]  %s4, 4096, %s26, [#allocation3], 128, 128, 8
    $region21: #{tpu_custom_call.1} parent=1 // pred_fallthru
      _
    // Predicated region
    $region22: #{tpu_custom_call.1} parent=1 // pred_check
      _
    $region23: #{tpu_custom_call.1} parent=1 // pred_check_branch
      %33 = sbr.rel (0) target = $region25
    $region24: #{tpu_custom_call.1} parent=1 // pred_region
      _
    $region25: #{tpu_custom_call.1} parent=1 // pred_fallthru
      _
    // Predicated region
    $region26: #{tpu_custom_call.1} parent=1 // pred_check
      _
    $region27: #{tpu_custom_call.1} parent=1 // pred_check_branch
      %35 = sbr.rel (0) target = $region29
    $region28: #{tpu_custom_call.1} parent=1 // pred_region
      %36 = dma.done [#allocation3], 4096
    $region29: #{tpu_custom_call.1} parent=1 // pred_fallthru
      _
    %v37 = vld [vmem:[%s0] sm:$0x1f]
    %v38 = vld [vmem:[%s1] sm:$0x7f]
    %v39 = vld [vmem:[%s5] sm:$0x1]
    %v41 = vlaneseq
    %v42 = vshrl.u32 %v41, 7
    %v43 = vsub.s32 0, %v42
    %v44 = vrot.slane %v39, %v43
    %v46 = vld [vmem:[%s2] sm:$0x1f]
    %vm47 = vcmask 39936
    %v49 = vsel %vm47, %v37, 0
    %vm51 = vcmask 1044480
    %v53 = vsel %vm51, %v46, 0
    %55 = vmatprep.subr.mxu0 0.0
    %56 = vmatpush1.msra.mxu0 0.0
    %57 = vmatprep.subr.mxu0 0.0
    %58 = vmatpush1.msra.mxu0 0.0
    %59 = vmatprep.subr.mxu0 0.0
    %60 = vmatpush1.msra.mxu0 0.0
    %61 = vmatprep.subr.mxu0 0.0
    %62 = vmatpush1.msra.mxu0 0.0
    %63 = vmatprep.subr.mxu0 0.0
    %64 = vmatpush1.msra.mxu0 0.0
    %65 = vmatprep.subr.mxu0 0.0
    %66 = vmatpush1.msra.mxu0 0.0
    %67 = vmatprep.subr.mxu0 0.0
    %68 = vmatpush1.msra.mxu0 0.0
    %69 = vmatprep.subr.mxu0 0.0
    %70 = vmatpush1.msra.mxu0 0.0
    %71 = vmatprep.subr.mxu0 0.0
    %72 = vmatpush1.msra.mxu0 0.0
    %73 = vmatprep.subr.mxu0 0.0
    %74 = vmatpush1.msra.mxu0 0.0
    %75 = vmatprep.subr.mxu0 0.0
    %76 = vmatpush1.msra.mxu0 0.0
    %77 = vmatprep.subr.mxu0 0.0
    %78 = vmatpush1.msra.mxu0 0.0
    %79 = vmatprep.subr.mxu0 0.0
    %80 = vmatpush1.msra.mxu0 0.0
    %81 = vmatprep.subr.mxu0 0.0
    %82 = vmatpush1.msra.mxu0 0.0
    %83 = vmatprep.subr.mxu0 0.0
    %84 = vmatpush1.msra.mxu0 0.0
    %85 = vmatprep.subr.mxu0 0.0
    %86 = vmatpush1.msra.mxu0 %v53
    %87 = vmatprep.subr.mxu0 0.0
    %88 = vmatpush2.msra.mxu0 0.0
    %89 = vmatprep.subr.mxu0 0.0
    %90 = vmatpush2.msra.mxu0 0.0
    %91 = vmatprep.subr.mxu0 0.0
    %92 = vmatpush2.msra.mxu0 0.0
    %93 = vmatprep.subr.mxu0 0.0
    %94 = vmatpush2.msra.mxu0 0.0
    %95 = vmatprep.subr.mxu0 0.0
    %96 = vmatpush2.msra.mxu0 0.0
    %97 = vmatprep.subr.mxu0 0.0
    %98 = vmatpush2.msra.mxu0 0.0
    %99 = vmatprep.subr.mxu0 0.0
    %100 = vmatpush2.msra.mxu0 0.0
    %101 = vmatprep.subr.mxu0 0.0
    %102 = vmatpush2.msra.mxu0 0.0
    %103 = vmatprep.subr.mxu0 0.0
    %104 = vmatpush2.msra.mxu0 0.0
    %105 = vmatprep.subr.mxu0 0.0
    %106 = vmatpush2.msra.mxu0 0.0
    %107 = vmatprep.subr.mxu0 0.0
    %108 = vmatpush2.msra.mxu0 0.0
    %109 = vmatprep.subr.mxu0 0.0
    %110 = vmatpush2.msra.mxu0 0.0
    %111 = vmatprep.subr.mxu0 0.0
    %112 = vmatpush2.msra.mxu0 0.0
    %113 = vmatprep.subr.mxu0 0.0
    %114 = vmatpush2.msra.mxu0 0.0
    %115 = vmatprep.subr.mxu0 0.0
    %116 = vmatpush2.msra.mxu0 0.0
    %117 = vmatprep.subr.mxu0 0.0
    %118 = vmatpush2.msra.mxu0 0.0
    %119 = vmatprep.mubr.f32.mxu0 0.0
    %120 = vmatmul.mubr.f32.gmra.mxu0 %v49
    %v121 = vpop.f32.mrf.mxu0
    %v122 = vadd.f32 0.0, %v121
    %v123 = vpop.f32.mrf.mxu0
    %124 = vdwg.mxu0
    %v125 = vld [vmem:[%s3] sm:$0x1f]
    %v126 = vld [vmem:[%s3 + $0x8] sm:$0x1f]
    %v128 = vsel %vm47, %v38, 0
    %v131 = vsel %vm51, %v125, 0
    %v134 = vsel %vm51, %v126, 0
    %136 = vmatprep.subr.mxu0 0.0
    %137 = vmatpush1.msra.mxu0 0.0
    %138 = vmatprep.subr.mxu0 0.0
    %139 = vmatpush1.msra.mxu0 0.0
    %140 = vmatprep.subr.mxu0 0.0
    %141 = vmatpush1.msra.mxu0 0.0
    %142 = vmatprep.subr.mxu0 0.0
    %143 = vmatpush1.msra.mxu0 0.0
    %144 = vmatprep.subr.mxu0 0.0
    %145 = vmatpush1.msra.mxu0 0.0
    %146 = vmatprep.subr.mxu0 0.0
    %147 = vmatpush1.msra.mxu0 0.0
    %148 = vmatprep.subr.mxu0 0.0
    %149 = vmatpush1.msra.mxu0 0.0
    %150 = vmatprep.subr.mxu0 0.0
    %151 = vmatpush1.msra.mxu0 0.0
    %152 = vmatprep.subr.mxu0 0.0
    %153 = vmatpush1.msra.mxu0 0.0
    %154 = vmatprep.subr.mxu0 0.0
    %155 = vmatpush1.msra.mxu0 0.0
    %156 = vmatprep.subr.mxu0 0.0
    %157 = vmatpush1.msra.mxu0 0.0
    %158 = vmatprep.subr.mxu0 0.0
    %159 = vmatpush1.msra.mxu0 0.0
    %160 = vmatprep.subr.mxu0 0.0
    %161 = vmatpush1.msra.mxu0 0.0
    %162 = vmatprep.subr.mxu0 0.0
    %163 = vmatpush1.msra.mxu0 0.0
    %164 = vmatprep.subr.mxu0 0.0
    %165 = vmatpush1.msra.mxu0 0.0
    %166 = vmatprep.subr.mxu0 %v134
    %167 = vmatpush1.msra.mxu0 %v131
    %168 = vmatprep.subr.mxu0 0.0
    %169 = vmatpush2.msra.mxu0 0.0
    %170 = vmatprep.subr.mxu0 0.0
    %171 = vmatpush2.msra.mxu0 0.0
    %172 = vmatprep.subr.mxu0 0.0
    %173 = vmatpush2.msra.mxu0 0.0
    %174 = vmatprep.subr.mxu0 0.0
    %175 = vmatpush2.msra.mxu0 0.0
    %176 = vmatprep.subr.mxu0 0.0
    %177 = vmatpush2.msra.mxu0 0.0
    %178 = vmatprep.subr.mxu0 0.0
    %179 = vmatpush2.msra.mxu0 0.0
    %180 = vmatprep.subr.mxu0 0.0
    %181 = vmatpush2.msra.mxu0 0.0
    %182 = vmatprep.subr.mxu0 0.0
    %183 = vmatpush2.msra.mxu0 0.0
    %184 = vmatprep.subr.mxu0 0.0
    %185 = vmatpush2.msra.mxu0 0.0
    %186 = vmatprep.subr.mxu0 0.0
    %187 = vmatpush2.msra.mxu0 0.0
    %188 = vmatprep.subr.mxu0 0.0
    %189 = vmatpush2.msra.mxu0 0.0
    %190 = vmatprep.subr.mxu0 0.0
    %191 = vmatpush2.msra.mxu0 0.0
    %192 = vmatprep.subr.mxu0 0.0
    %193 = vmatpush2.msra.mxu0 0.0
    %194 = vmatprep.subr.mxu0 0.0
    %195 = vmatpush2.msra.mxu0 0.0
    %196 = vmatprep.subr.mxu0 0.0
    %197 = vmatpush2.msra.mxu0 0.0
    %198 = vmatprep.subr.mxu0 0.0
    %199 = vmatpush2.msra.mxu0 0.0
    %200 = vmatprep.mubr.f32.mxu0 0.0
    %201 = vmatmul.mubr.f32.gmra.mxu0 %v128
    %v202 = vpop.f32.mrf.mxu0
    %v203 = vadd.f32 0.0, %v202
    %v204 = vpop.f32.mrf.mxu0
    %v205 = vadd.f32 0.0, %v204
    %206 = vdwg.mxu0
    %207 = vmatprep.subr.mxu0 0.0
    %208 = vmatpush1.xpose.msra.mxu0 0.0
    %209 = vmatprep.subr.mxu0 0.0
    %210 = vmatpush1.xpose.msra.mxu0 0.0
    %211 = vmatprep.subr.mxu0 0.0
    %212 = vmatpush1.xpose.msra.mxu0 0.0
    %213 = vmatprep.subr.mxu0 0.0
    %214 = vmatpush1.xpose.msra.mxu0 0.0
    %215 = vmatprep.subr.mxu0 0.0
    %216 = vmatpush1.xpose.msra.mxu0 0.0
    %217 = vmatprep.subr.mxu0 0.0
    %218 = vmatpush1.xpose.msra.mxu0 0.0
    %219 = vmatprep.subr.mxu0 0.0
    %220 = vmatpush1.xpose.msra.mxu0 0.0
    %221 = vmatprep.subr.mxu0 0.0
    %222 = vmatpush1.xpose.msra.mxu0 0.0
    %223 = vmatprep.subr.mxu0 0.0
    %224 = vmatpush1.xpose.msra.mxu0 0.0
    %225 = vmatprep.subr.mxu0 0.0
    %226 = vmatpush1.xpose.msra.mxu0 0.0
    %227 = vmatprep.subr.mxu0 0.0
    %228 = vmatpush1.xpose.msra.mxu0 0.0
    %229 = vmatprep.subr.mxu0 0.0
    %230 = vmatpush1.xpose.msra.mxu0 0.0
    %231 = vmatprep.subr.mxu0 0.0
    %232 = vmatpush1.xpose.msra.mxu0 0.0
    %233 = vmatprep.subr.mxu0 0.0
    %234 = vmatpush1.xpose.msra.mxu0 0.0
    %235 = vmatprep.subr.mxu0 0.0
    %236 = vmatpush1.xpose.msra.mxu0 0.0
    %237 = vmatprep.subr.mxu0 0.0
    %238 = vmatpush1.xpose.msra.mxu0 %v203
    %239 = vmatprep.subr.mxu0 0.0
    %240 = vmatpush2.xpose.msra.mxu0 0.0
    %241 = vmatprep.subr.mxu0 0.0
    %242 = vmatpush2.xpose.msra.mxu0 0.0
    %243 = vmatprep.subr.mxu0 0.0
    %244 = vmatpush2.xpose.msra.mxu0 0.0
    %245 = vmatprep.subr.mxu0 0.0
    %246 = vmatpush2.xpose.msra.mxu0 0.0
    %247 = vmatprep.subr.mxu0 0.0
    %248 = vmatpush2.xpose.msra.mxu0 0.0
    %249 = vmatprep.subr.mxu0 0.0
    %250 = vmatpush2.xpose.msra.mxu0 0.0
    %251 = vmatprep.subr.mxu0 0.0
    %252 = vmatpush2.xpose.msra.mxu0 0.0
    %253 = vmatprep.subr.mxu0 0.0
    %254 = vmatpush2.xpose.msra.mxu0 0.0
    %255 = vmatprep.subr.mxu0 0.0
    %256 = vmatpush2.xpose.msra.mxu0 0.0
    %257 = vmatprep.subr.mxu0 0.0
    %258 = vmatpush2.xpose.msra.mxu0 0.0
    %259 = vmatprep.subr.mxu0 0.0
    %260 = vmatpush2.xpose.msra.mxu0 0.0
    %261 = vmatprep.subr.mxu0 0.0
    %262 = vmatpush2.xpose.msra.mxu0 0.0
    %263 = vmatprep.subr.mxu0 0.0
    %264 = vmatpush2.xpose.msra.mxu0 0.0
    %265 = vmatprep.subr.mxu0 0.0
    %266 = vmatpush2.xpose.msra.mxu0 0.0
    %267 = vmatprep.subr.mxu0 0.0
    %268 = vmatpush2.xpose.msra.mxu0 0.0
    %269 = vmatprep.subr.mxu0 0.0
    %270 = vmatpush2.xpose.msra.mxu0 0.0
    %271 = vmatprep.mubr.f32.mxu0 0.0
    %272 = vmatmul.mubr.f32.gmra.mxu0 %v122
    %v273 = vpop.f32.mrf.mxu0
    %v274 = vadd.f32 0.0, %v273
    %v275 = vpop.f32.mrf.mxu0
    %276 = vdwg.mxu0
    %vm277 = vcmask 53248
    %v278 = vsel %vm277, %v274, -inf
    %279 = vmax.xlane.f32.xlu0 %v278
    %v280 = vpop.xlane.xlu0 %279
    %v281 = vsub.f32 %v274, %v280
    %v282 = vmul.f32 %v281, 1.442695
    %v283 = vpow.pop %v282
    %v284 = vsel %vm277, %v283, 0.0
    %285 = vadd.xlane.f32.xlu0 %v284
    %v286 = vpop.xlane.xlu0 %285
    %v287 = vrcp.pop %v286
    %v288 = vmul.f32 %v283, %v287
    %vm289 = vcmask 56320
    %v291 = vsel %vm289, %v288, 0
    %vm293 = vcmask 1046528
    %v295 = vsel %vm293, %v205, 0
    %297 = vmatprep.subr.mxu0 0.0
    %298 = vmatpush1.msra.mxu0 0.0
    %299 = vmatprep.subr.mxu0 0.0
    %300 = vmatpush1.msra.mxu0 0.0
    %301 = vmatprep.subr.mxu0 0.0
    %302 = vmatpush1.msra.mxu0 0.0
    %303 = vmatprep.subr.mxu0 0.0
    %304 = vmatpush1.msra.mxu0 0.0
    %305 = vmatprep.subr.mxu0 0.0
    %306 = vmatpush1.msra.mxu0 0.0
    %307 = vmatprep.subr.mxu0 0.0
    %308 = vmatpush1.msra.mxu0 0.0
    %309 = vmatprep.subr.mxu0 0.0
    %310 = vmatpush1.msra.mxu0 0.0
    %311 = vmatprep.subr.mxu0 0.0
    %312 = vmatpush1.msra.mxu0 0.0
    %313 = vmatprep.subr.mxu0 0.0
    %314 = vmatpush1.msra.mxu0 0.0
    %315 = vmatprep.subr.mxu0 0.0
    %316 = vmatpush1.msra.mxu0 0.0
    %317 = vmatprep.subr.mxu0 0.0
    %318 = vmatpush1.msra.mxu0 0.0
    %319 = vmatprep.subr.mxu0 0.0
    %320 = vmatpush1.msra.mxu0 0.0
    %321 = vmatprep.subr.mxu0 0.0
    %322 = vmatpush1.msra.mxu0 0.0
    %323 = vmatprep.subr.mxu0 0.0
    %324 = vmatpush1.msra.mxu0 0.0
    %325 = vmatprep.subr.mxu0 0.0
    %326 = vmatpush1.msra.mxu0 0.0
    %327 = vmatprep.subr.mxu0 0.0
    %328 = vmatpush1.msra.mxu0 %v295
    %329 = vmatprep.subr.mxu0 0.0
    %330 = vmatpush2.msra.mxu0 0.0
    %331 = vmatprep.subr.mxu0 0.0
    %332 = vmatpush2.msra.mxu0 0.0
    %333 = vmatprep.subr.mxu0 0.0
    %334 = vmatpush2.msra.mxu0 0.0
    %335 = vmatprep.subr.mxu0 0.0
    %336 = vmatpush2.msra.mxu0 0.0
    %337 = vmatprep.subr.mxu0 0.0
    %338 = vmatpush2.msra.mxu0 0.0
    %339 = vmatprep.subr.mxu0 0.0
    %340 = vmatpush2.msra.mxu0 0.0
    %341 = vmatprep.subr.mxu0 0.0
    %342 = vmatpush2.msra.mxu0 0.0
    %343 = vmatprep.subr.mxu0 0.0
    %344 = vmatpush2.msra.mxu0 0.0
    %345 = vmatprep.subr.mxu0 0.0
    %346 = vmatpush2.msra.mxu0 0.0
    %347 = vmatprep.subr.mxu0 0.0
    %348 = vmatpush2.msra.mxu0 0.0
    %349 = vmatprep.subr.mxu0 0.0
    %350 = vmatpush2.msra.mxu0 0.0
    %351 = vmatprep.subr.mxu0 0.0
    %352 = vmatpush2.msra.mxu0 0.0
    %353 = vmatprep.subr.mxu0 0.0
    %354 = vmatpush2.msra.mxu0 0.0
    %355 = vmatprep.subr.mxu0 0.0
    %356 = vmatpush2.msra.mxu0 0.0
    %357 = vmatprep.subr.mxu0 0.0
    %358 = vmatpush2.msra.mxu0 0.0
    %359 = vmatprep.subr.mxu0 0.0
    %360 = vmatpush2.msra.mxu0 0.0
    %361 = vmatprep.mubr.f32.mxu0 0.0
    %362 = vmatmul.mubr.f32.gmra.mxu0 %v291
    %v363 = vpop.f32.mrf.mxu0
    %v364 = vadd.f32 0.0, %v363
    %v365 = vpop.f32.mrf.mxu0
    %366 = vdwg.mxu0
    %v367 = vld [vmem:[#allocation2] sm:$0xff]
    %v368 = vld [vmem:[#allocation2 + $0x8] sm:$0xff]
    %v369 = vld [vmem:[#allocation2 + $0x10] sm:$0xff]
    %v370 = vld [vmem:[#allocation2 + $0x18] sm:$0xff]
    %v371 = vld [vmem:[#allocation2 + $0x20] sm:$0xff]
    %v372 = vld [vmem:[#allocation2 + $0x28] sm:$0xff]
    %v373 = vld [vmem:[#allocation2 + $0x30] sm:$0xff]
    %v374 = vld [vmem:[#allocation2 + $0x38] sm:$0xff]
    %v375 = vld [vmem:[#allocation2 + $0x40] sm:$0xff]
    %v376 = vld [vmem:[#allocation2 + $0x48] sm:$0xff]
    %v377 = vld [vmem:[#allocation2 + $0x50] sm:$0xff]
    %v378 = vld [vmem:[#allocation2 + $0x58] sm:$0xff]
    %v379 = vld [vmem:[#allocation2 + $0x60] sm:$0xff]
    %v380 = vld [vmem:[#allocation2 + $0x68] sm:$0xff]
    %v381 = vld [vmem:[#allocation2 + $0x70] sm:$0xff]
    %v382 = vld [vmem:[#allocation2 + $0x78] sm:$0xff]
    %383 = vmatprep.subr.mxu0 0.0
    %384 = vmatpush1.msra.mxu0 %v382
    %385 = vmatprep.subr.mxu0 0.0
    %386 = vmatpush1.msra.mxu0 %v381
    %387 = vmatprep.subr.mxu0 0.0
    %388 = vmatpush1.msra.mxu0 %v380
    %389 = vmatprep.subr.mxu0 0.0
    %390 = vmatpush1.msra.mxu0 %v379
    %391 = vmatprep.subr.mxu0 0.0
    %392 = vmatpush1.msra.mxu0 %v378
    %393 = vmatprep.subr.mxu0 0.0
    %394 = vmatpush1.msra.mxu0 %v377
    %395 = vmatprep.subr.mxu0 0.0
    %396 = vmatpush1.msra.mxu0 %v376
    %397 = vmatprep.subr.mxu0 0.0
    %398 = vmatpush1.msra.mxu0 %v375
    %399 = vmatprep.subr.mxu0 0.0
    %400 = vmatpush1.msra.mxu0 %v374
    %401 = vmatprep.subr.mxu0 0.0
    %402 = vmatpush1.msra.mxu0 %v373
    %403 = vmatprep.subr.mxu0 0.0
    %404 = vmatpush1.msra.mxu0 %v372
    %405 = vmatprep.subr.mxu0 0.0
    %406 = vmatpush1.msra.mxu0 %v371
    %407 = vmatprep.subr.mxu0 0.0
    %408 = vmatpush1.msra.mxu0 %v370
    %409 = vmatprep.subr.mxu0 0.0
    %410 = vmatpush1.msra.mxu0 %v369
    %411 = vmatprep.subr.mxu0 0.0
    %412 = vmatpush1.msra.mxu0 %v368
    %413 = vmatprep.subr.mxu0 0.0
    %414 = vmatpush1.msra.mxu0 %v367
    %415 = vmatprep.subr.mxu0 0.0
    %416 = vmatpush2.msra.mxu0 0.0
    %417 = vmatprep.subr.mxu0 0.0
    %418 = vmatpush2.msra.mxu0 0.0
    %419 = vmatprep.subr.mxu0 0.0
    %420 = vmatpush2.msra.mxu0 0.0
    %421 = vmatprep.subr.mxu0 0.0
    %422 = vmatpush2.msra.mxu0 0.0
    %423 = vmatprep.subr.mxu0 0.0
    %424 = vmatpush2.msra.mxu0 0.0
    %425 = vmatprep.subr.mxu0 0.0
    %426 = vmatpush2.msra.mxu0 0.0
    %427 = vmatprep.subr.mxu0 0.0
    %428 = vmatpush2.msra.mxu0 0.0
    %429 = vmatprep.subr.mxu0 0.0
    %430 = vmatpush2.msra.mxu0 0.0
    %431 = vmatprep.subr.mxu0 0.0
    %432 = vmatpush2.msra.mxu0 0.0
    %433 = vmatprep.subr.mxu0 0.0
    %434 = vmatpush2.msra.mxu0 0.0
    %435 = vmatprep.subr.mxu0 0.0
    %436 = vmatpush2.msra.mxu0 0.0
    %437 = vmatprep.subr.mxu0 0.0
    %438 = vmatpush2.msra.mxu0 0.0
    %439 = vmatprep.subr.mxu0 0.0
    %440 = vmatpush2.msra.mxu0 0.0
    %441 = vmatprep.subr.mxu0 0.0
    %442 = vmatpush2.msra.mxu0 0.0
    %443 = vmatprep.subr.mxu0 0.0
    %444 = vmatpush2.msra.mxu0 0.0
    %445 = vmatprep.subr.mxu0 0.0
    %446 = vmatpush2.msra.mxu0 0.0
    %447 = vmatprep.mubr.f32.mxu0 0.0
    %448 = vmatmul.mubr.f32.gmra.mxu0 %v364
    %v449 = vpop.f32.mrf.mxu0
    %v450 = vadd.f32 0.0, %v449
    %v451 = vpop.f32.mrf.mxu0
    %452 = vdwg.mxu0
    %v453 = vadd.f32 %v44, %v450
    %s454 = scalar_lea.vmem %s2, 8
    %v455 = vld [vmem:[%s454] sm:$0x1f]
    %v457 = vsel %vm51, %v455, 0
    %459 = vmatprep.subr.mxu0 0.0
    %460 = vmatpush1.msra.mxu0 0.0
    %461 = vmatprep.subr.mxu0 0.0
    %462 = vmatpush1.msra.mxu0 0.0
    %463 = vmatprep.subr.mxu0 0.0
    %464 = vmatpush1.msra.mxu0 0.0
    %465 = vmatprep.subr.mxu0 0.0
    %466 = vmatpush1.msra.mxu0 0.0
    %467 = vmatprep.subr.mxu0 0.0
    %468 = vmatpush1.msra.mxu0 0.0
    %469 = vmatprep.subr.mxu0 0.0
    %470 = vmatpush1.msra.mxu0 0.0
    %471 = vmatprep.subr.mxu0 0.0
    %472 = vmatpush1.msra.mxu0 0.0
    %473 = vmatprep.subr.mxu0 0.0
    %474 = vmatpush1.msra.mxu0 0.0
    %475 = vmatprep.subr.mxu0 0.0
    %476 = vmatpush1.msra.mxu0 0.0
    %477 = vmatprep.subr.mxu0 0.0
    %478 = vmatpush1.msra.mxu0 0.0
    %479 = vmatprep.subr.mxu0 0.0
    %480 = vmatpush1.msra.mxu0 0.0
    %481 = vmatprep.subr.mxu0 0.0
    %482 = vmatpush1.msra.mxu0 0.0
    %483 = vmatprep.subr.mxu0 0.0
    %484 = vmatpush1.msra.mxu0 0.0
    %485 = vmatprep.subr.mxu0 0.0
    %486 = vmatpush1.msra.mxu0 0.0
    %487 = vmatprep.subr.mxu0 0.0
    %488 = vmatpush1.msra.mxu0 0.0
    %489 = vmatprep.subr.mxu0 0.0
    %490 = vmatpush1.msra.mxu0 %v457
    %491 = vmatprep.subr.mxu0 0.0
    %492 = vmatpush2.msra.mxu0 0.0
    %493 = vmatprep.subr.mxu0 0.0
    %494 = vmatpush2.msra.mxu0 0.0
    %495 = vmatprep.subr.mxu0 0.0
    %496 = vmatpush2.msra.mxu0 0.0
    %497 = vmatprep.subr.mxu0 0.0
    %498 = vmatpush2.msra.mxu0 0.0
    %499 = vmatprep.subr.mxu0 0.0
    %500 = vmatpush2.msra.mxu0 0.0
    %501 = vmatprep.subr.mxu0 0.0
    %502 = vmatpush2.msra.mxu0 0.0
    %503 = vmatprep.subr.mxu0 0.0
    %504 = vmatpush2.msra.mxu0 0.0
    %505 = vmatprep.subr.mxu0 0.0
    %506 = vmatpush2.msra.mxu0 0.0
    %507 = vmatprep.subr.mxu0 0.0
    %508 = vmatpush2.msra.mxu0 0.0
    %509 = vmatprep.subr.mxu0 0.0
    %510 = vmatpush2.msra.mxu0 0.0
    %511 = vmatprep.subr.mxu0 0.0
    %512 = vmatpush2.msra.mxu0 0.0
    %513 = vmatprep.subr.mxu0 0.0
    %514 = vmatpush2.msra.mxu0 0.0
    %515 = vmatprep.subr.mxu0 0.0
    %516 = vmatpush2.msra.mxu0 0.0
    %517 = vmatprep.subr.mxu0 0.0
    %518 = vmatpush2.msra.mxu0 0.0
    %519 = vmatprep.subr.mxu0 0.0
    %520 = vmatpush2.msra.mxu0 0.0
    %521 = vmatprep.subr.mxu0 0.0
    %522 = vmatpush2.msra.mxu0 0.0
    %523 = vmatprep.mubr.f32.mxu0 0.0
    %524 = vmatmul.mubr.f32.gmra.mxu0 %v49
    %v525 = vpop.f32.mrf.mxu0
    %v526 = vadd.f32 0.0, %v525
    %v527 = vpop.f32.mrf.mxu0
    %528 = vdwg.mxu0
    %s529 = scalar_lea.vmem %s3, 16
    %v530 = vld [vmem:[%s529] sm:$0x1f]
    %v531 = vld [vmem:[%s529 + $0x8] sm:$0x1f]
    %v533 = vsel %vm51, %v530, 0
    %v536 = vsel %vm51, %v531, 0
    %538 = vmatprep.subr.mxu0 0.0
    %539 = vmatpush1.msra.mxu0 0.0
    %540 = vmatprep.subr.mxu0 0.0
    %541 = vmatpush1.msra.mxu0 0.0
    %542 = vmatprep.subr.mxu0 0.0
    %543 = vmatpush1.msra.mxu0 0.0
    %544 = vmatprep.subr.mxu0 0.0
    %545 = vmatpush1.msra.mxu0 0.0
    %546 = vmatprep.subr.mxu0 0.0
    %547 = vmatpush1.msra.mxu0 0.0
    %548 = vmatprep.subr.mxu0 0.0
    %549 = vmatpush1.msra.mxu0 0.0
    %550 = vmatprep.subr.mxu0 0.0
    %551 = vmatpush1.msra.mxu0 0.0
    %552 = vmatprep.subr.mxu0 0.0
    %553 = vmatpush1.msra.mxu0 0.0
    %554 = vmatprep.subr.mxu0 0.0
    %555 = vmatpush1.msra.mxu0 0.0
    %556 = vmatprep.subr.mxu0 0.0
    %557 = vmatpush1.msra.mxu0 0.0
    %558 = vmatprep.subr.mxu0 0.0
    %559 = vmatpush1.msra.mxu0 0.0
    %560 = vmatprep.subr.mxu0 0.0
    %561 = vmatpush1.msra.mxu0 0.0
    %562 = vmatprep.subr.mxu0 0.0
    %563 = vmatpush1.msra.mxu0 0.0
    %564 = vmatprep.subr.mxu0 0.0
    %565 = vmatpush1.msra.mxu0 0.0
    %566 = vmatprep.subr.mxu0 0.0
    %567 = vmatpush1.msra.mxu0 0.0
    %568 = vmatprep.subr.mxu0 %v536
    %569 = vmatpush1.msra.mxu0 %v533
    %570 = vmatprep.subr.mxu0 0.0
    %571 = vmatpush2.msra.mxu0 0.0
    %572 = vmatprep.subr.mxu0 0.0
    %573 = vmatpush2.msra.mxu0 0.0
    %574 = vmatprep.subr.mxu0 0.0
    %575 = vmatpush2.msra.mxu0 0.0
    %576 = vmatprep.subr.mxu0 0.0
    %577 = vmatpush2.msra.mxu0 0.0
    %578 = vmatprep.subr.mxu0 0.0
    %579 = vmatpush2.msra.mxu0 0.0
    %580 = vmatprep.subr.mxu0 0.0
    %581 = vmatpush2.msra.mxu0 0.0
    %582 = vmatprep.subr.mxu0 0.0
    %583 = vmatpush2.msra.mxu0 0.0
    %584 = vmatprep.subr.mxu0 0.0
    %585 = vmatpush2.msra.mxu0 0.0
    %586 = vmatprep.subr.mxu0 0.0
    %587 = vmatpush2.msra.mxu0 0.0
    %588 = vmatprep.subr.mxu0 0.0
    %589 = vmatpush2.msra.mxu0 0.0
    %590 = vmatprep.subr.mxu0 0.0
    %591 = vmatpush2.msra.mxu0 0.0
    %592 = vmatprep.subr.mxu0 0.0
    %593 = vmatpush2.msra.mxu0 0.0
    %594 = vmatprep.subr.mxu0 0.0
    %595 = vmatpush2.msra.mxu0 0.0
    %596 = vmatprep.subr.mxu0 0.0
    %597 = vmatpush2.msra.mxu0 0.0
    %598 = vmatprep.subr.mxu0 0.0
    %599 = vmatpush2.msra.mxu0 0.0
    %600 = vmatprep.subr.mxu0 0.0
    %601 = vmatpush2.msra.mxu0 0.0
    %602 = vmatprep.mubr.f32.mxu0 0.0
    %603 = vmatmul.mubr.f32.gmra.mxu0 %v128
    %v604 = vpop.f32.mrf.mxu0
    %v605 = vadd.f32 0.0, %v604
    %v606 = vpop.f32.mrf.mxu0
    %v607 = vadd.f32 0.0, %v606
    %608 = vdwg.mxu0
    %609 = vmatprep.subr.mxu0 0.0
    %610 = vmatpush1.xpose.msra.mxu0 0.0
    %611 = vmatprep.subr.mxu0 0.0
    %612 = vmatpush1.xpose.msra.mxu0 0.0
    %613 = vmatprep.subr.mxu0 0.0
    %614 = vmatpush1.xpose.msra.mxu0 0.0
    %615 = vmatprep.subr.mxu0 0.0
    %616 = vmatpush1.xpose.msra.mxu0 0.0
    %617 = vmatprep.subr.mxu0 0.0
    %618 = vmatpush1.xpose.msra.mxu0 0.0
    %619 = vmatprep.subr.mxu0 0.0
    %620 = vmatpush1.xpose.msra.mxu0 0.0
    %621 = vmatprep.subr.mxu0 0.0
    %622 = vmatpush1.xpose.msra.mxu0 0.0
    %623 = vmatprep.subr.mxu0 0.0
    %624 = vmatpush1.xpose.msra.mxu0 0.0
    %625 = vmatprep.subr.mxu0 0.0
    %626 = vmatpush1.xpose.msra.mxu0 0.0
    %627 = vmatprep.subr.mxu0 0.0
    %628 = vmatpush1.xpose.msra.mxu0 0.0
    %629 = vmatprep.subr.mxu0 0.0
    %630 = vmatpush1.xpose.msra.mxu0 0.0
    %631 = vmatprep.subr.mxu0 0.0
    %632 = vmatpush1.xpose.msra.mxu0 0.0
    %633 = vmatprep.subr.mxu0 0.0
    %634 = vmatpush1.xpose.msra.mxu0 0.0
    %635 = vmatprep.subr.mxu0 0.0
    %636 = vmatpush1.xpose.msra.mxu0 0.0
    %637 = vmatprep.subr.mxu0 0.0
    %638 = vmatpush1.xpose.msra.mxu0 0.0
    %639 = vmatprep.subr.mxu0 0.0
    %640 = vmatpush1.xpose.msra.mxu0 %v605
    %641 = vmatprep.subr.mxu0 0.0
    %642 = vmatpush2.xpose.msra.mxu0 0.0
    %643 = vmatprep.subr.mxu0 0.0
    %644 = vmatpush2.xpose.msra.mxu0 0.0
    %645 = vmatprep.subr.mxu0 0.0
    %646 = vmatpush2.xpose.msra.mxu0 0.0
    %647 = vmatprep.subr.mxu0 0.0
    %648 = vmatpush2.xpose.msra.mxu0 0.0
    %649 = vmatprep.subr.mxu0 0.0
    %650 = vmatpush2.xpose.msra.mxu0 0.0
    %651 = vmatprep.subr.mxu0 0.0
    %652 = vmatpush2.xpose.msra.mxu0 0.0
    %653 = vmatprep.subr.mxu0 0.0
    %654 = vmatpush2.xpose.msra.mxu0 0.0
    %655 = vmatprep.subr.mxu0 0.0
    %656 = vmatpush2.xpose.msra.mxu0 0.0
    %657 = vmatprep.subr.mxu0 0.0
    %658 = vmatpush2.xpose.msra.mxu0 0.0
    %659 = vmatprep.subr.mxu0 0.0
    %660 = vmatpush2.xpose.msra.mxu0 0.0
    %661 = vmatprep.subr.mxu0 0.0
    %662 = vmatpush2.xpose.msra.mxu0 0.0
    %663 = vmatprep.subr.mxu0 0.0
    %664 = vmatpush2.xpose.msra.mxu0 0.0
    %665 = vmatprep.subr.mxu0 0.0
    %666 = vmatpush2.xpose.msra.mxu0 0.0
    %667 = vmatprep.subr.mxu0 0.0
    %668 = vmatpush2.xpose.msra.mxu0 0.0
    %669 = vmatprep.subr.mxu0 0.0
    %670 = vmatpush2.xpose.msra.mxu0 0.0
    %671 = vmatprep.subr.mxu0 0.0
    %672 = vmatpush2.xpose.msra.mxu0 0.0
    %673 = vmatprep.mubr.f32.mxu0 0.0
    %674 = vmatmul.mubr.f32.gmra.mxu0 %v526
    %v675 = vpop.f32.mrf.mxu0
    %v676 = vadd.f32 0.0, %v675
    %v677 = vpop.f32.mrf.mxu0
    %678 = vdwg.mxu0
    %v679 = vsel %vm277, %v676, -inf
    %680 = vmax.xlane.f32.xlu0 %v679
    %v681 = vpop.xlane.xlu0 %680
    %v682 = vsub.f32 %v676, %v681
    %v683 = vmul.f32 %v682, 1.442695
    %v684 = vpow.pop %v683
    %v685 = vsel %vm277, %v684, 0.0
    %686 = vadd.xlane.f32.xlu0 %v685
    %v687 = vpop.xlane.xlu0 %686
    %v688 = vrcp.pop %v687
    %v689 = vmul.f32 %v684, %v688
    %v691 = vsel %vm289, %v689, 0
    %v694 = vsel %vm293, %v607, 0
    %696 = vmatprep.subr.mxu0 0.0
    %697 = vmatpush1.msra.mxu0 0.0
    %698 = vmatprep.subr.mxu0 0.0
    %699 = vmatpush1.msra.mxu0 0.0
    %700 = vmatprep.subr.mxu0 0.0
    %701 = vmatpush1.msra.mxu0 0.0
    %702 = vmatprep.subr.mxu0 0.0
    %703 = vmatpush1.msra.mxu0 0.0
    %704 = vmatprep.subr.mxu0 0.0
    %705 = vmatpush1.msra.mxu0 0.0
    %706 = vmatprep.subr.mxu0 0.0
    %707 = vmatpush1.msra.mxu0 0.0
    %708 = vmatprep.subr.mxu0 0.0
    %709 = vmatpush1.msra.mxu0 0.0
    %710 = vmatprep.subr.mxu0 0.0
    %711 = vmatpush1.msra.mxu0 0.0
    %712 = vmatprep.subr.mxu0 0.0
    %713 = vmatpush1.msra.mxu0 0.0
    %714 = vmatprep.subr.mxu0 0.0
    %715 = vmatpush1.msra.mxu0 0.0
    %716 = vmatprep.subr.mxu0 0.0
    %717 = vmatpush1.msra.mxu0 0.0
    %718 = vmatprep.subr.mxu0 0.0
    %719 = vmatpush1.msra.mxu0 0.0
    %720 = vmatprep.subr.mxu0 0.0
    %721 = vmatpush1.msra.mxu0 0.0
    %722 = vmatprep.subr.mxu0 0.0
    %723 = vmatpush1.msra.mxu0 0.0
    %724 = vmatprep.subr.mxu0 0.0
    %725 = vmatpush1.msra.mxu0 0.0
    %726 = vmatprep.subr.mxu0 0.0
    %727 = vmatpush1.msra.mxu0 %v694
    %728 = vmatprep.subr.mxu0 0.0
    %729 = vmatpush2.msra.mxu0 0.0
    %730 = vmatprep.subr.mxu0 0.0
    %731 = vmatpush2.msra.mxu0 0.0
    %732 = vmatprep.subr.mxu0 0.0
    %733 = vmatpush2.msra.mxu0 0.0
    %734 = vmatprep.subr.mxu0 0.0
    %735 = vmatpush2.msra.mxu0 0.0
    %736 = vmatprep.subr.mxu0 0.0
    %737 = vmatpush2.msra.mxu0 0.0
    %738 = vmatprep.subr.mxu0 0.0
    %739 = vmatpush2.msra.mxu0 0.0
    %740 = vmatprep.subr.mxu0 0.0
    %741 = vmatpush2.msra.mxu0 0.0
    %742 = vmatprep.subr.mxu0 0.0
    %743 = vmatpush2.msra.mxu0 0.0
    %744 = vmatprep.subr.mxu0 0.0
    %745 = vmatpush2.msra.mxu0 0.0
    %746 = vmatprep.subr.mxu0 0.0
    %747 = vmatpush2.msra.mxu0 0.0
    %748 = vmatprep.subr.mxu0 0.0
    %749 = vmatpush2.msra.mxu0 0.0
    %750 = vmatprep.subr.mxu0 0.0
    %751 = vmatpush2.msra.mxu0 0.0
    %752 = vmatprep.subr.mxu0 0.0
    %753 = vmatpush2.msra.mxu0 0.0
    %754 = vmatprep.subr.mxu0 0.0
    %755 = vmatpush2.msra.mxu0 0.0
    %756 = vmatprep.subr.mxu0 0.0
    %757 = vmatpush2.msra.mxu0 0.0
    %758 = vmatprep.subr.mxu0 0.0
    %759 = vmatpush2.msra.mxu0 0.0
    %760 = vmatprep.mubr.f32.mxu0 0.0
    %761 = vmatmul.mubr.f32.gmra.mxu0 %v691
    %v762 = vpop.f32.mrf.mxu0
    %v763 = vadd.f32 0.0, %v762
    %v764 = vpop.f32.mrf.mxu0
    %765 = vdwg.mxu0
    %s766 = scalar_lea.vmem [#allocation2], 128
    %v767 = vld [vmem:[%s766] sm:$0xff]
    %v768 = vld [vmem:[%s766 + $0x8] sm:$0xff]
    %v769 = vld [vmem:[%s766 + $0x10] sm:$0xff]
    %v770 = vld [vmem:[%s766 + $0x18] sm:$0xff]
    %v771 = vld [vmem:[%s766 + $0x20] sm:$0xff]
    %v772 = vld [vmem:[%s766 + $0x28] sm:$0xff]
    %v773 = vld [vmem:[%s766 + $0x30] sm:$0xff]
    %v774 = vld [vmem:[%s766 + $0x38] sm:$0xff]
    %v775 = vld [vmem:[%s766 + $0x40] sm:$0xff]
    %v776 = vld [vmem:[%s766 + $0x48] sm:$0xff]
    %v777 = vld [vmem:[%s766 + $0x50] sm:$0xff]
    %v778 = vld [vmem:[%s766 + $0x58] sm:$0xff]
    %v779 = vld [vmem:[%s766 + $0x60] sm:$0xff]
    %v780 = vld [vmem:[%s766 + $0x68] sm:$0xff]
    %v781 = vld [vmem:[%s766 + $0x70] sm:$0xff]
    %v782 = vld [vmem:[%s766 + $0x78] sm:$0xff]
    %783 = vmatprep.subr.mxu0 0.0
    %784 = vmatpush1.msra.mxu0 %v782
    %785 = vmatprep.subr.mxu0 0.0
    %786 = vmatpush1.msra.mxu0 %v781
    %787 = vmatprep.subr.mxu0 0.0
    %788 = vmatpush1.msra.mxu0 %v780
    %789 = vmatprep.subr.mxu0 0.0
    %790 = vmatpush1.msra.mxu0 %v779
    %791 = vmatprep.subr.mxu0 0.0
    %792 = vmatpush1.msra.mxu0 %v778
    %793 = vmatprep.subr.mxu0 0.0
    %794 = vmatpush1.msra.mxu0 %v777
    %795 = vmatprep.subr.mxu0 0.0
    %796 = vmatpush1.msra.mxu0 %v776
    %797 = vmatprep.subr.mxu0 0.0
    %798 = vmatpush1.msra.mxu0 %v775
    %799 = vmatprep.subr.mxu0 0.0
    %800 = vmatpush1.msra.mxu0 %v774
    %801 = vmatprep.subr.mxu0 0.0
    %802 = vmatpush1.msra.mxu0 %v773
    %803 = vmatprep.subr.mxu0 0.0
    %804 = vmatpush1.msra.mxu0 %v772
    %805 = vmatprep.subr.mxu0 0.0
    %806 = vmatpush1.msra.mxu0 %v771
    %807 = vmatprep.subr.mxu0 0.0
    %808 = vmatpush1.msra.mxu0 %v770
    %809 = vmatprep.subr.mxu0 0.0
    %810 = vmatpush1.msra.mxu0 %v769
    %811 = vmatprep.subr.mxu0 0.0
    %812 = vmatpush1.msra.mxu0 %v768
    %813 = vmatprep.subr.mxu0 0.0
    %814 = vmatpush1.msra.mxu0 %v767
    %815 = vmatprep.subr.mxu0 0.0
    %816 = vmatpush2.msra.mxu0 0.0
    %817 = vmatprep.subr.mxu0 0.0
    %818 = vmatpush2.msra.mxu0 0.0
    %819 = vmatprep.subr.mxu0 0.0
    %820 = vmatpush2.msra.mxu0 0.0
    %821 = vmatprep.subr.mxu0 0.0
    %822 = vmatpush2.msra.mxu0 0.0
    %823 = vmatprep.subr.mxu0 0.0
    %824 = vmatpush2.msra.mxu0 0.0
    %825 = vmatprep.subr.mxu0 0.0
    %826 = vmatpush2.msra.mxu0 0.0
    %827 = vmatprep.subr.mxu0 0.0
    %828 = vmatpush2.msra.mxu0 0.0
    %829 = vmatprep.subr.mxu0 0.0
    %830 = vmatpush2.msra.mxu0 0.0
    %831 = vmatprep.subr.mxu0 0.0
    %832 = vmatpush2.msra.mxu0 0.0
    %833 = vmatprep.subr.mxu0 0.0
    %834 = vmatpush2.msra.mxu0 0.0
    %835 = vmatprep.subr.mxu0 0.0
    %836 = vmatpush2.msra.mxu0 0.0
    %837 = vmatprep.subr.mxu0 0.0
    %838 = vmatpush2.msra.mxu0 0.0
    %839 = vmatprep.subr.mxu0 0.0
    %840 = vmatpush2.msra.mxu0 0.0
    %841 = vmatprep.subr.mxu0 0.0
    %842 = vmatpush2.msra.mxu0 0.0
    %843 = vmatprep.subr.mxu0 0.0
    %844 = vmatpush2.msra.mxu0 0.0
    %845 = vmatprep.subr.mxu0 0.0
    %846 = vmatpush2.msra.mxu0 0.0
    %847 = vmatprep.mubr.f32.mxu0 0.0
    %848 = vmatmul.mubr.f32.gmra.mxu0 %v763
    %v849 = vpop.f32.mrf.mxu0
    %v850 = vadd.f32 0.0, %v849
    %v851 = vpop.f32.mrf.mxu0
    %852 = vdwg.mxu0
    %v853 = vadd.f32 %v453, %v850
    %854 = vst [vmem:[%s6] sm:$0x1f] %v853
    // Predicated region
    $region30: #{tpu_custom_call.1} parent=1 // pred_check
      _
    $region31: #{tpu_custom_call.1} parent=1 // pred_check_branch
      %856 = sbr.rel (0) target = $region33
    $region32: #{tpu_custom_call.1} parent=1 // pred_region
      _
    $region33: #{tpu_custom_call.1} parent=1 // pred_fallthru
      _
    // Predicated region
    $region34: #{tpu_custom_call.1} parent=1 // pred_check
      _
    $region35: #{tpu_custom_call.1} parent=1 // pred_check_branch
      %858 = sbr.rel (0) target = $region37
    $region36: #{tpu_custom_call.1} parent=1 // pred_region
      _
    $region37: #{tpu_custom_call.1} parent=1 // pred_fallthru
      _
    %859 = vsyncpa [#allocation3], 1

</llo_original>
